<compile_context>
chip_gen: v6e
topology: v6e:2x2x1
jax: 0.10.0
libtpu: 0.0.40
codegen_flags: <defaults>
</compile_context>

<pallas_src>
import functools

import jax
import jax.numpy as jnp
import numpy as np
from jax.experimental import pallas as pl
from jax.experimental.pallas import tpu as pltpu


def _leaky(v):
    # nn.LeakyReLU default negative_slope = 0.01
    return jnp.where(v > 0, v, 0.01 * v)


def bdq_kernel(x1_ref, x2_ref, e1_ref, e2_ref,
               wbil_ref, bbil_ref,     # (S*T, 256), (1, 256)
               w1_ref, b1_ref,         # (256, 128), (1, 128)
               w2_ref, b2_ref,         # (128, 64),  (1, 64)
               w3_ref, b3_ref,         # (64, 32),   (1, 32)
               wc1_ref, bc1_ref,       # fused value+adv layer-1: (32, 64*(n+1)), (1, 64*(n+1))
               wq_ref, bq_ref,         # fused layer-2 + dueling combine: (64*(n+1), n*A), (1, n*A)
               q_ref):                 # out: (TB, n*A)  lane-packed
    f32 = jnp.float32
    x1 = x1_ref[...]                   # (TB, S)
    x2 = x2_ref[...]                   # (TB, T)

    # --- Bilinear: z[b, i*T+j] = x1[b,i] * x2[b,j], built with two tiny
    # replication matmuls against constant 0/1 matrices (avoids in-kernel
    # reshapes), then one (TB, S*T) @ (S*T, 256) MXU matmul.
    x1e = jnp.dot(x1, e1_ref[...], preferred_element_type=f32)   # (TB, S*T)
    x2e = jnp.dot(x2, e2_ref[...], preferred_element_type=f32)   # (TB, S*T)
    z = x1e * x2e
    h = _leaky(jnp.dot(z, wbil_ref[...], preferred_element_type=f32) + bbil_ref[...])

    # --- MLP trunk 256 -> 128 -> 64 -> 32
    h = _leaky(jnp.dot(h, w1_ref[...], preferred_element_type=f32) + b1_ref[...])
    h = _leaky(jnp.dot(h, w2_ref[...], preferred_element_type=f32) + b2_ref[...])
    feat = _leaky(jnp.dot(h, w3_ref[...], preferred_element_type=f32) + b3_ref[...])  # (TB, 32)

    # --- fused first layers of value head + n advantage heads: (TB,32)@(32,256)
    hcat = _leaky(jnp.dot(feat, wc1_ref[...], preferred_element_type=f32) + bc1_ref[...])

    # --- fused second layers with the dueling combine folded into wq/bq:
    # q[b, i*A+a] = value[b] + adv[b,i,a] - mean_a(adv[b,i,:])
    # Single matmul + single lane-dense store.
    q_ref[...] = jnp.dot(hcat, wq_ref[...], preferred_element_type=f32) + bq_ref[...]


def branching_q_forward(x1, x2, packed, n, ac_dim, batch_tile=128):
    B, S = x1.shape
    T = x2.shape[1]
    nA = n * ac_dim

    # Batch tile: multiple of the 8-row sublane tile; pad batch up to it.
    TB = min(batch_tile, ((B + 7) // 8) * 8)
    Bp = ((B + TB - 1) // TB) * TB
    if Bp != B:
        x1 = jnp.pad(x1, ((0, Bp - B), (0, 0)))
        x2 = jnp.pad(x2, ((0, Bp - B), (0, 0)))

    weights = [packed["e1"], packed["e2"],
               packed["wbil2d"], packed["bbil"],
               packed["w1t"], packed["b1"],
               packed["w2t"], packed["b2"],
               packed["w3t"], packed["b3"],
               packed["wc1"], packed["bc1"],
               packed["wq"], packed["bq"]]

    def wspec(a):
        # Whole weight resident in VMEM every grid step (total < 0.3 MiB).
        return pl.BlockSpec(a.shape, lambda b: (0, 0))

    q_packed = pl.pallas_call(
        bdq_kernel,
        out_shape=jax.ShapeDtypeStruct((Bp, nA), jnp.float32),
        grid=(Bp // TB,),
        in_specs=[pl.BlockSpec((TB, S), lambda b: (b, 0)),
                  pl.BlockSpec((TB, T), lambda b: (b, 0))]
                 + [wspec(a) for a in weights],
        out_specs=pl.BlockSpec((TB, nA), lambda b: (b, 0)),
        compiler_params=pltpu.CompilerParams(
            dimension_semantics=("parallel",)),
    )(x1, x2, *weights)

    return q_packed[:B].reshape(B, n, ac_dim)


def pack_params(p, n, A):
    """Host-side packing: reshape bilinear weight, build replication matrices,
    fuse head layers and fold the dueling combine into the last weight."""
    S, T, H = p["wbil"].shape

    # Replication matrices for the outer-product feature.
    k = np.arange(S * T)
    e1 = (k[None, :] // T == np.arange(S)[:, None]).astype(np.float32)  # (S, S*T)
    e2 = (k[None, :] % T == np.arange(T)[:, None]).astype(np.float32)   # (T, S*T)

    # Fused first layer of [value head | adv head 0 | ... | adv head n-1].
    wc1 = jnp.concatenate([p["wv1t"]] + [p["wa1t"][i] for i in range(n)], axis=1)  # (32, 64*(n+1))
    bc1 = jnp.concatenate([p["bv1"]] + [p["ba1"][i] for i in range(n)], axis=1)    # (1, 64*(n+1))

    # Fused second layer with dueling combine folded in:
    # q[:, i*A+a] = hcat[:, :64] @ wv2 + bv2
    #            + hcat[:, 64(i+1):64(i+2)] @ (wa2[i][:,a] - mean_a wa2[i])
    #            + (ba2[i,a] - mean_a ba2[i])
    wv2 = np.asarray(p["wv2t"], np.float32)          # (64, 1)
    bv2 = np.asarray(p["bv2"], np.float32)           # (1, 1)
    wa2 = np.asarray(p["wa2t"], np.float32)          # (n, 64, A)
    ba2 = np.asarray(p["ba2"], np.float32)           # (n, 1, A)
    wq = np.zeros((64 * (n + 1), n * A), np.float32)
    bq = np.zeros((1, n * A), np.float32)
    for i in range(n):
        cols = slice(i * A, (i + 1) * A)
        wq[0:64, cols] = wv2                                              # value into every column
        wq[64 * (i + 1):64 * (i + 2), cols] = wa2[i] - wa2[i].mean(axis=1, keepdims=True)
        bq[0, cols] = bv2[0, 0] + ba2[i, 0] - ba2[i, 0].mean()

    return {
        "e1": jnp.asarray(e1), "e2": jnp.asarray(e2),
        "wbil2d": p["wbil"].reshape(S * T, H), "bbil": p["bbil"],
        "w1t": p["w1t"], "b1": p["b1"],
        "w2t": p["w2t"], "b2": p["b2"],
        "w3t": p["w3t"], "b3": p["b3"],
        "wc1": wc1, "bc1": bc1,
        "wq": jnp.asarray(wq), "bq": jnp.asarray(bq),
    }


def reference_forward(x1, x2, p):
    """Pure-JAX reference mirroring the PyTorch forward (unfused params)."""
    h = jnp.einsum("bi,bj,ijh->bh", x1, x2, p["wbil"]) + p["bbil"][0]
    h = _leaky(h)
    h = _leaky(h @ p["w1t"] + p["b1"][0])
    h = _leaky(h @ p["w2t"] + p["b2"][0])
    feat = _leaky(h @ p["w3t"] + p["b3"][0])
    hv = _leaky(feat @ p["wv1t"] + p["bv1"][0])
    value = hv @ p["wv2t"] + p["bv2"][0]                                    # (B, 1)
    ha = _leaky(jnp.einsum("bd,ndh->bnh", feat, p["wa1t"]) + p["ba1"][:, 0][None])
    adv = jnp.einsum("bnh,nha->bna", ha, p["wa2t"]) + p["ba2"][:, 0][None]  # (B, n, A)
    return value[:, :, None] + adv - adv.mean(axis=2, keepdims=True)


def make_params(key, state_dim, target_dim, ac_dim, n):
    ks = jax.random.split(key, 20)
    f = jnp.float32
    def rnd(k, shape, scale=0.1):
        return jax.random.normal(k, shape, dtype=f) * scale
    return {
        # Bilinear weight stored as (in1, in2, out); bias as (1, out)
        "wbil": rnd(ks[0], (state_dim, target_dim, 256)),
        "bbil": rnd(ks[1], (1, 256)),
        # trunk Linear weights stored transposed: (in, out)
        "w1t": rnd(ks[2], (256, 128)), "b1": rnd(ks[3], (1, 128)),
        "w2t": rnd(ks[4], (128, 64)),  "b2": rnd(ks[5], (1, 64)),
        "w3t": rnd(ks[6], (64, 32)),   "b3": rnd(ks[7], (1, 32)),
        # value head
        "wv1t": rnd(ks[8], (32, 64)),  "bv1": rnd(ks[9], (1, 64)),
        "wv2t": rnd(ks[10], (64, 1)),  "bv2": rnd(ks[11], (1, 1)),
        # advantage heads, stacked over n
        "wa1t": rnd(ks[12], (n, 32, 64)),     "ba1": rnd(ks[13], (n, 1, 64)),
        "wa2t": rnd(ks[14], (n, 64, ac_dim)), "ba2": rnd(ks[15], (n, 1, ac_dim)),
    }


if __name__ == "__main__":
    # Small shapes consistent with the module: observation = (state, target).
    batch, state_dim, target_dim = 8, 16, 8   # batch = full 8-row sublane tile
    ac_dim, n_actions = 6, 3

    key = jax.random.PRNGKey(0)
    k_params, k_x1, k_x2 = jax.random.split(key, 3)
    params = make_params(k_params, state_dim, target_dim, ac_dim, n_actions)
    packed = pack_params(params, n_actions, ac_dim)

    x_state = jax.random.normal(k_x1, (batch, state_dim), dtype=jnp.float32)
    x_target = jax.random.normal(k_x2, (batch, target_dim), dtype=jnp.float32)

    q = jax.block_until_ready(
        branching_q_forward(x_state, x_target, packed, n_actions, ac_dim))
    q_ref = jax.block_until_ready(reference_forward(x_state, x_target, params))
    assert q.shape == (batch, n_actions, ac_dim)
    np.testing.assert_allclose(np.asarray(q), np.asarray(q_ref), rtol=1e-4, atol=1e-4)

    # Also exercise the batch-padding path (non-multiple-of-8 batch).
    q5 = jax.block_until_ready(
        branching_q_forward(x_state[:5], x_target[:5], packed, n_actions, ac_dim))
    np.testing.assert_allclose(np.asarray(q5), np.asarray(q_ref)[:5], rtol=1e-4, atol=1e-4)

    print("KERNEL_OK")
</pallas_src>

<mosaic_0001>
module attributes {stable_mosaic.version = 11 : i64} {
  func.func @bdq_kernel(%arg0: i32, %arg1: memref<8x16xf32, #tpu.memory_space<vmem>>, %arg2: memref<8x8xf32, #tpu.memory_space<vmem>>, %arg3: memref<16x128xf32, #tpu.memory_space<vmem>>, %arg4: memref<8x128xf32, #tpu.memory_space<vmem>>, %arg5: memref<128x256xf32, #tpu.memory_space<vmem>>, %arg6: memref<1x256xf32, #tpu.memory_space<vmem>>, %arg7: memref<256x128xf32, #tpu.memory_space<vmem>>, %arg8: memref<1x128xf32, #tpu.memory_space<vmem>>, %arg9: memref<128x64xf32, #tpu.memory_space<vmem>>, %arg10: memref<1x64xf32, #tpu.memory_space<vmem>>, %arg11: memref<64x32xf32, #tpu.memory_space<vmem>>, %arg12: memref<1x32xf32, #tpu.memory_space<vmem>>, %arg13: memref<32x256xf32, #tpu.memory_space<vmem>>, %arg14: memref<1x256xf32, #tpu.memory_space<vmem>>, %arg15: memref<256x18xf32, #tpu.memory_space<vmem>>, %arg16: memref<1x18xf32, #tpu.memory_space<vmem>>, %arg17: memref<8x18xf32, #tpu.memory_space<vmem>>) attributes {dimension_semantics = [#tpu.dimension_semantics<parallel>], iteration_bounds = array<i64: 1>, scalar_prefetch = 0 : i64, scratch_operands = 0 : i64, tpu.core_type = #tpu.core_type<tc>, window_params = [{transform_indices = @transform_0, window_bounds = array<i64: 8, 16>}, {transform_indices = @transform_1, window_bounds = array<i64: 8, 8>}, {pipeline_mode = #tpu.pipeline_mode<synchronous>, transform_indices = @transform_2, window_bounds = array<i64: 16, 128>}, {pipeline_mode = #tpu.pipeline_mode<synchronous>, transform_indices = @transform_3, window_bounds = array<i64: 8, 128>}, {pipeline_mode = #tpu.pipeline_mode<synchronous>, transform_indices = @transform_4, window_bounds = array<i64: 128, 256>}, {pipeline_mode = #tpu.pipeline_mode<synchronous>, transform_indices = @transform_5, window_bounds = array<i64: 1, 256>}, {pipeline_mode = #tpu.pipeline_mode<synchronous>, transform_indices = @transform_6, window_bounds = array<i64: 256, 128>}, {pipeline_mode = #tpu.pipeline_mode<synchronous>, transform_indices = @transform_7, window_bounds = array<i64: 1, 128>}, {pipeline_mode = #tpu.pipeline_mode<synchronous>, transform_indices = @transform_8, window_bounds = array<i64: 128, 64>}, {pipeline_mode = #tpu.pipeline_mode<synchronous>, transform_indices = @transform_9, window_bounds = array<i64: 1, 64>}, {pipeline_mode = #tpu.pipeline_mode<synchronous>, transform_indices = @transform_10, window_bounds = array<i64: 64, 32>}, {pipeline_mode = #tpu.pipeline_mode<synchronous>, transform_indices = @transform_11, window_bounds = array<i64: 1, 32>}, {pipeline_mode = #tpu.pipeline_mode<synchronous>, transform_indices = @transform_12, window_bounds = array<i64: 32, 256>}, {pipeline_mode = #tpu.pipeline_mode<synchronous>, transform_indices = @transform_13, window_bounds = array<i64: 1, 256>}, {pipeline_mode = #tpu.pipeline_mode<synchronous>, transform_indices = @transform_14, window_bounds = array<i64: 256, 18>}, {pipeline_mode = #tpu.pipeline_mode<synchronous>, transform_indices = @transform_15, window_bounds = array<i64: 1, 18>}, {transform_indices = @transform_16, window_bounds = array<i64: 8, 18>}]} {
    %c0 = arith.constant 0 : index
    %c0_0 = arith.constant 0 : index
    %0 = vector.load %arg1[%c0, %c0_0] : memref<8x16xf32, #tpu.memory_space<vmem>>, vector<8x16xf32>
    %c0_1 = arith.constant 0 : index
    %c0_2 = arith.constant 0 : index
    %1 = vector.load %arg2[%c0_1, %c0_2] : memref<8x8xf32, #tpu.memory_space<vmem>>, vector<8x8xf32>
    %c0_3 = arith.constant 0 : index
    %c0_4 = arith.constant 0 : index
    %2 = vector.load %arg3[%c0_3, %c0_4] : memref<16x128xf32, #tpu.memory_space<vmem>>, vector<16x128xf32>
    %cst = arith.constant dense<0.000000e+00> : vector<8x128xf32>
    %3 = tpu.matmul %0, %2, %cst {dimension_numbers = #tpu.dot_dimension_numbers<[1], [0], [0], [1], [0, 0, 1, 1], [], []>} : vector<8x16xf32>, vector<16x128xf32>, vector<8x128xf32> -> vector<8x128xf32>
    %c0_5 = arith.constant 0 : index
    %c0_6 = arith.constant 0 : index
    %4 = vector.load %arg4[%c0_5, %c0_6] : memref<8x128xf32, #tpu.memory_space<vmem>>, vector<8x128xf32>
    %cst_7 = arith.constant dense<0.000000e+00> : vector<8x128xf32>
    %5 = tpu.matmul %1, %4, %cst_7 {dimension_numbers = #tpu.dot_dimension_numbers<[1], [0], [0], [1], [0, 0, 1, 1], [], []>} : vector<8x8xf32>, vector<8x128xf32>, vector<8x128xf32> -> vector<8x128xf32>
    %6 = arith.mulf %3, %5 : vector<8x128xf32>
    %c0_8 = arith.constant 0 : index
    %c0_9 = arith.constant 0 : index
    %7 = vector.load %arg5[%c0_8, %c0_9] : memref<128x256xf32, #tpu.memory_space<vmem>>, vector<128x256xf32>
    %cst_10 = arith.constant dense<0.000000e+00> : vector<8x256xf32>
    %8 = tpu.matmul %6, %7, %cst_10 {dimension_numbers = #tpu.dot_dimension_numbers<[1], [0], [0], [1], [0, 0, 1, 1], [], []>} : vector<8x128xf32>, vector<128x256xf32>, vector<8x256xf32> -> vector<8x256xf32>
    %c0_11 = arith.constant 0 : index
    %c0_12 = arith.constant 0 : index
    %9 = vector.load %arg6[%c0_11, %c0_12] : memref<1x256xf32, #tpu.memory_space<vmem>>, vector<1x256xf32>
    %10 = vector.broadcast %9 : vector<1x256xf32> to vector<8x256xf32>
    %11 = arith.addf %8, %10 : vector<8x256xf32>
    %cst_13 = arith.constant 0.000000e+00 : f32
    %12 = vector.broadcast %cst_13 : f32 to vector<8x256xf32>
    %13 = arith.cmpf ogt, %11, %12 : vector<8x256xf32>
    %cst_14 = arith.constant 0.00999999977 : f32
    %14 = vector.broadcast %cst_14 : f32 to vector<8x256xf32>
    %15 = arith.mulf %14, %11 : vector<8x256xf32>
    %16 = arith.select %13, %11, %15 : vector<8x256xi1>, vector<8x256xf32>
    %c0_15 = arith.constant 0 : index
    %c0_16 = arith.constant 0 : index
    %17 = vector.load %arg7[%c0_15, %c0_16] : memref<256x128xf32, #tpu.memory_space<vmem>>, vector<256x128xf32>
    %cst_17 = arith.constant dense<0.000000e+00> : vector<8x128xf32>
    %18 = tpu.matmul %16, %17, %cst_17 {dimension_numbers = #tpu.dot_dimension_numbers<[1], [0], [0], [1], [0, 0, 1, 1], [], []>} : vector<8x256xf32>, vector<256x128xf32>, vector<8x128xf32> -> vector<8x128xf32>
    %c0_18 = arith.constant 0 : index
    %c0_19 = arith.constant 0 : index
    %19 = vector.load %arg8[%c0_18, %c0_19] : memref<1x128xf32, #tpu.memory_space<vmem>>, vector<1x128xf32>
    %20 = vector.broadcast %19 : vector<1x128xf32> to vector<8x128xf32>
    %21 = arith.addf %18, %20 : vector<8x128xf32>
    %cst_20 = arith.constant 0.000000e+00 : f32
    %22 = vector.broadcast %cst_20 : f32 to vector<8x128xf32>
    %23 = arith.cmpf ogt, %21, %22 : vector<8x128xf32>
    %cst_21 = arith.constant 0.00999999977 : f32
    %24 = vector.broadcast %cst_21 : f32 to vector<8x128xf32>
    %25 = arith.mulf %24, %21 : vector<8x128xf32>
    %26 = arith.select %23, %21, %25 : vector<8x128xi1>, vector<8x128xf32>
    %c0_22 = arith.constant 0 : index
    %c0_23 = arith.constant 0 : index
    %27 = vector.load %arg9[%c0_22, %c0_23] : memref<128x64xf32, #tpu.memory_space<vmem>>, vector<128x64xf32>
    %cst_24 = arith.constant dense<0.000000e+00> : vector<8x64xf32>
    %28 = tpu.matmul %26, %27, %cst_24 {dimension_numbers = #tpu.dot_dimension_numbers<[1], [0], [0], [1], [0, 0, 1, 1], [], []>} : vector<8x128xf32>, vector<128x64xf32>, vector<8x64xf32> -> vector<8x64xf32>
    %c0_25 = arith.constant 0 : index
    %c0_26 = arith.constant 0 : index
    %29 = vector.load %arg10[%c0_25, %c0_26] : memref<1x64xf32, #tpu.memory_space<vmem>>, vector<1x64xf32>
    %30 = vector.broadcast %29 : vector<1x64xf32> to vector<8x64xf32>
    %31 = arith.addf %28, %30 : vector<8x64xf32>
    %cst_27 = arith.constant 0.000000e+00 : f32
    %32 = vector.broadcast %cst_27 : f32 to vector<8x64xf32>
    %33 = arith.cmpf ogt, %31, %32 : vector<8x64xf32>
    %cst_28 = arith.constant 0.00999999977 : f32
    %34 = vector.broadcast %cst_28 : f32 to vector<8x64xf32>
    %35 = arith.mulf %34, %31 : vector<8x64xf32>
    %36 = arith.select %33, %31, %35 : vector<8x64xi1>, vector<8x64xf32>
    %c0_29 = arith.constant 0 : index
    %c0_30 = arith.constant 0 : index
    %37 = vector.load %arg11[%c0_29, %c0_30] : memref<64x32xf32, #tpu.memory_space<vmem>>, vector<64x32xf32>
    %cst_31 = arith.constant dense<0.000000e+00> : vector<8x32xf32>
    %38 = tpu.matmul %36, %37, %cst_31 {dimension_numbers = #tpu.dot_dimension_numbers<[1], [0], [0], [1], [0, 0, 1, 1], [], []>} : vector<8x64xf32>, vector<64x32xf32>, vector<8x32xf32> -> vector<8x32xf32>
    %c0_32 = arith.constant 0 : index
    %c0_33 = arith.constant 0 : index
    %39 = vector.load %arg12[%c0_32, %c0_33] : memref<1x32xf32, #tpu.memory_space<vmem>>, vector<1x32xf32>
    %40 = vector.broadcast %39 : vector<1x32xf32> to vector<8x32xf32>
    %41 = arith.addf %38, %40 : vector<8x32xf32>
    %cst_34 = arith.constant 0.000000e+00 : f32
    %42 = vector.broadcast %cst_34 : f32 to vector<8x32xf32>
    %43 = arith.cmpf ogt, %41, %42 : vector<8x32xf32>
    %cst_35 = arith.constant 0.00999999977 : f32
    %44 = vector.broadcast %cst_35 : f32 to vector<8x32xf32>
    %45 = arith.mulf %44, %41 : vector<8x32xf32>
    %46 = arith.select %43, %41, %45 : vector<8x32xi1>, vector<8x32xf32>
    %c0_36 = arith.constant 0 : index
    %c0_37 = arith.constant 0 : index
    %47 = vector.load %arg13[%c0_36, %c0_37] : memref<32x256xf32, #tpu.memory_space<vmem>>, vector<32x256xf32>
    %cst_38 = arith.constant dense<0.000000e+00> : vector<8x256xf32>
    %48 = tpu.matmul %46, %47, %cst_38 {dimension_numbers = #tpu.dot_dimension_numbers<[1], [0], [0], [1], [0, 0, 1, 1], [], []>} : vector<8x32xf32>, vector<32x256xf32>, vector<8x256xf32> -> vector<8x256xf32>
    %c0_39 = arith.constant 0 : index
    %c0_40 = arith.constant 0 : index
    %49 = vector.load %arg14[%c0_39, %c0_40] : memref<1x256xf32, #tpu.memory_space<vmem>>, vector<1x256xf32>
    %50 = vector.broadcast %49 : vector<1x256xf32> to vector<8x256xf32>
    %51 = arith.addf %48, %50 : vector<8x256xf32>
    %cst_41 = arith.constant 0.000000e+00 : f32
    %52 = vector.broadcast %cst_41 : f32 to vector<8x256xf32>
    %53 = arith.cmpf ogt, %51, %52 : vector<8x256xf32>
    %cst_42 = arith.constant 0.00999999977 : f32
    %54 = vector.broadcast %cst_42 : f32 to vector<8x256xf32>
    %55 = arith.mulf %54, %51 : vector<8x256xf32>
    %56 = arith.select %53, %51, %55 : vector<8x256xi1>, vector<8x256xf32>
    %c0_43 = arith.constant 0 : index
    %c0_44 = arith.constant 0 : index
    %57 = vector.load %arg15[%c0_43, %c0_44] : memref<256x18xf32, #tpu.memory_space<vmem>>, vector<256x18xf32>
    %cst_45 = arith.constant dense<0.000000e+00> : vector<8x18xf32>
    %58 = tpu.matmul %56, %57, %cst_45 {dimension_numbers = #tpu.dot_dimension_numbers<[1], [0], [0], [1], [0, 0, 1, 1], [], []>} : vector<8x256xf32>, vector<256x18xf32>, vector<8x18xf32> -> vector<8x18xf32>
    %c0_46 = arith.constant 0 : index
    %c0_47 = arith.constant 0 : index
    %59 = vector.load %arg16[%c0_46, %c0_47] : memref<1x18xf32, #tpu.memory_space<vmem>>, vector<1x18xf32>
    %60 = vector.broadcast %59 : vector<1x18xf32> to vector<8x18xf32>
    %61 = arith.addf %58, %60 : vector<8x18xf32>
    %c0_48 = arith.constant 0 : index
    %c0_49 = arith.constant 0 : index
    %62 = vector.load %arg17[%c0_48, %c0_49] : memref<8x18xf32, #tpu.memory_space<vmem>>, vector<8x18xf32>
    tpu.vector_store %arg17[%c0_48, %c0_49], %61 {strides = array<i32>} : memref<8x18xf32, #tpu.memory_space<vmem>>, vector<8x18xf32>,
    return
  }
  func.func @transform_0(%arg0: i32) -> (i32, i32) {
    %c0_i32 = arith.constant 0 : i32
    %c0_i32_0 = arith.constant 0 : i32
    return %arg0, %c0_i32 : i32, i32
  }
  func.func @transform_1(%arg0: i32) -> (i32, i32) {
    %c0_i32 = arith.constant 0 : i32
    %c0_i32_0 = arith.constant 0 : i32
    return %arg0, %c0_i32 : i32, i32
  }
  func.func @transform_2(%arg0: i32) -> (i32, i32) {
    %c0_i32 = arith.constant 0 : i32
    %c0_i32_0 = arith.constant 0 : i32
    %c0_i32_1 = arith.constant 0 : i32
    return %c0_i32, %c0_i32_0 : i32, i32
  }
  func.func @transform_3(%arg0: i32) -> (i32, i32) {
    %c0_i32 = arith.constant 0 : i32
    %c0_i32_0 = arith.constant 0 : i32
    %c0_i32_1 = arith.constant 0 : i32
    return %c0_i32, %c0_i32_0 : i32, i32
  }
  func.func @transform_4(%arg0: i32) -> (i32, i32) {
    %c0_i32 = arith.constant 0 : i32
    %c0_i32_0 = arith.constant 0 : i32
    %c0_i32_1 = arith.constant 0 : i32
    return %c0_i32, %c0_i32_0 : i32, i32
  }
  func.func @transform_5(%arg0: i32) -> (i32, i32) {
    %c0_i32 = arith.constant 0 : i32
    %c0_i32_0 = arith.constant 0 : i32
    %c0_i32_1 = arith.constant 0 : i32
    return %c0_i32, %c0_i32_0 : i32, i32
  }
  func.func @transform_6(%arg0: i32) -> (i32, i32) {
    %c0_i32 = arith.constant 0 : i32
    %c0_i32_0 = arith.constant 0 : i32
    %c0_i32_1 = arith.constant 0 : i32
    return %c0_i32, %c0_i32_0 : i32, i32
  }
  func.func @transform_7(%arg0: i32) -> (i32, i32) {
    %c0_i32 = arith.constant 0 : i32
    %c0_i32_0 = arith.constant 0 : i32
    %c0_i32_1 = arith.constant 0 : i32
    return %c0_i32, %c0_i32_0 : i32, i32
  }
  func.func @transform_8(%arg0: i32) -> (i32, i32) {
    %c0_i32 = arith.constant 0 : i32
    %c0_i32_0 = arith.constant 0 : i32
    %c0_i32_1 = arith.constant 0 : i32
    return %c0_i32, %c0_i32_0 : i32, i32
  }
  func.func @transform_9(%arg0: i32) -> (i32, i32) {
    %c0_i32 = arith.constant 0 : i32
    %c0_i32_0 = arith.constant 0 : i32
    %c0_i32_1 = arith.constant 0 : i32
    return %c0_i32, %c0_i32_0 : i32, i32
  }
  func.func @transform_10(%arg0: i32) -> (i32, i32) {
    %c0_i32 = arith.constant 0 : i32
    %c0_i32_0 = arith.constant 0 : i32
    %c0_i32_1 = arith.constant 0 : i32
    return %c0_i32, %c0_i32_0 : i32, i32
  }
  func.func @transform_11(%arg0: i32) -> (i32, i32) {
    %c0_i32 = arith.constant 0 : i32
    %c0_i32_0 = arith.constant 0 : i32
    %c0_i32_1 = arith.constant 0 : i32
    return %c0_i32, %c0_i32_0 : i32, i32
  }
  func.func @transform_12(%arg0: i32) -> (i32, i32) {
    %c0_i32 = arith.constant 0 : i32
    %c0_i32_0 = arith.constant 0 : i32
    %c0_i32_1 = arith.constant 0 : i32
    return %c0_i32, %c0_i32_0 : i32, i32
  }
  func.func @transform_13(%arg0: i32) -> (i32, i32) {
    %c0_i32 = arith.constant 0 : i32
    %c0_i32_0 = arith.constant 0 : i32
    %c0_i32_1 = arith.constant 0 : i32
    return %c0_i32, %c0_i32_0 : i32, i32
  }
  func.func @transform_14(%arg0: i32) -> (i32, i32) {
    %c0_i32 = arith.constant 0 : i32
    %c0_i32_0 = arith.constant 0 : i32
    %c0_i32_1 = arith.constant 0 : i32
    return %c0_i32, %c0_i32_0 : i32, i32
  }
  func.func @transform_15(%arg0: i32) -> (i32, i32) {
    %c0_i32 = arith.constant 0 : i32
    %c0_i32_0 = arith.constant 0 : i32
    %c0_i32_1 = arith.constant 0 : i32
    return %c0_i32, %c0_i32_0 : i32, i32
  }
  func.func @transform_16(%arg0: i32) -> (i32, i32) {
    %c0_i32 = arith.constant 0 : i32
    %c0_i32_0 = arith.constant 0 : i32
    return %arg0, %c0_i32 : i32, i32
  }
}

</mosaic_0001>

<llo_original>
// kernel: tpu_custom_call.1
$region0: #{tpu_custom_call.1}
  #allocation0 [shape = 'u32[]', space=smem, size = 0x4, offset = 0x4, fixed_abs, tag = 'smem constant byte address 0x4 - core index']
  #allocation1 [shape = 'u32[144,128]{1,0:T(1,128)}', space=vmem, size = 0x12000, scoped, tag = 'internal scratch']
  %s0 = inlined_call_operand.vmem [shape: f32[8,16], index: 0, kind: input, shape index: {}]
  %s1 = inlined_call_operand.hbm [shape: f32[8,8], index: 1, kind: input, shape index: {}]
  %s2 = inlined_call_operand.vmem [shape: f32[16,128], index: 2, kind: input, shape index: {}]
  %s3 = inlined_call_operand.hbm [shape: f32[8,128], index: 3, kind: input, shape index: {}]
  %s4 = inlined_call_operand.vmem [shape: f32[128,256], index: 4, kind: input, shape index: {}]
  %s5 = inlined_call_operand.vmem [shape: f32[1,256], index: 5, kind: input, shape index: {}]
  %s6 = inlined_call_operand.vmem [shape: f32[256,128], index: 6, kind: input, shape index: {}]
  %s7 = inlined_call_operand.vmem [shape: f32[1,128], index: 7, kind: input, shape index: {}]
  %s8 = inlined_call_operand.vmem [shape: f32[128,64], index: 8, kind: input, shape index: {}]
  %s9 = inlined_call_operand.vmem [shape: f32[1,64], index: 9, kind: input, shape index: {}]
  %s10 = inlined_call_operand.vmem [shape: f32[64,32], index: 10, kind: input, shape index: {}]
  %s11 = inlined_call_operand.hbm [shape: f32[1,32], index: 11, kind: input, shape index: {}]
  %s12 = inlined_call_operand.hbm [shape: f32[32,256], index: 12, kind: input, shape index: {}]
  %s13 = inlined_call_operand.vmem [shape: f32[1,256], index: 13, kind: input, shape index: {}]
  %s14 = inlined_call_operand.vmem [shape: f32[256,18], index: 14, kind: input, shape index: {}]
  %s15 = inlined_call_operand.vmem [shape: f32[1,18], index: 15, kind: input, shape index: {}]
  %s16 = inlined_call_operand.hbm [shape: f32[8,18], index: 16, kind: output, shape index: {}]
  %s17 = sld [smem:[#allocation0]]
  $region90: #{tpu_custom_call.1} parent=0
    _
  %s19 = ssub.s32 1, %s17
  %s20 = scalar_select 0, %s19, %s17
  $region1: #{tpu_custom_call.1} parent=0
    #allocation2 [shape = 'u8[4096]{0}', space=vmem, size = 0x1000, scoped, tag = 'input window, operand 1, single buffered']
    #allocation3 [shape = 's32[1]{0}', space=sflag, size = 0x4, scoped, tag = 'scoped memory for tpu_custom_call.1']
    #allocation4 [shape = 's32[1]{0}', space=sflag, size = 0x4, scoped, tag = 'scoped memory for tpu_custom_call.1']
    #allocation5 [shape = 'u8[4096]{0}', space=vmem, size = 0x1000, scoped, tag = 'input window, operand 3, single buffered']
    #allocation6 [shape = 's32[1]{0}', space=sflag, size = 0x4, scoped, tag = 'scoped memory for tpu_custom_call.1']
    #allocation7 [shape = 'u8[512]{0}', space=vmem, size = 0x400, scoped, tag = 'input window, operand 11, single buffered']
    #allocation8 [shape = 'u8[32768]{0}', space=vmem, size = 0x8000, scoped, tag = 'input window, operand 12, single buffered']
    #allocation9 [shape = 's32[1]{0}', space=sflag, size = 0x4, scoped, tag = 'scoped memory for tpu_custom_call.1']
    #allocation10 [shape = 'u8[4096]{0}', space=vmem, size = 0x1000, scoped, tag = 'output window, operand 0, single buffered']
    %21 = vsyncpa [#allocation3], 0
    %22 = vsyncpa [#allocation6], 0
    %23 = vsyncpa [#allocation9], 0
    %24 = vsyncpa [#allocation4], 0
    // Predicated region
    $region2: #{tpu_custom_call.1} parent=1 // pred_check
      _
    $region3: #{tpu_custom_call.1} parent=1 // pred_check_branch
      %26 = sbr.rel (0) target = $region5
    $region4: #{tpu_custom_call.1} parent=1 // pred_region
      _
    $region5: #{tpu_custom_call.1} parent=1 // pred_fallthru
      _
    // Predicated region
    $region6: #{tpu_custom_call.1} parent=1 // pred_check
      _
    $region7: #{tpu_custom_call.1} parent=1 // pred_check_branch
      %28 = sbr.rel (0) target = $region9
    $region8: #{tpu_custom_call.1} parent=1 // pred_region
      %s30 = ssub.s32 128, 128
      %31 = vsyncadd [#allocation3], %s30
      %s33 = sshll.u32 [#allocation2], 4
      %s34 = int_to_ptr.vmem [resolvable:$true] %s33
      %36 = dma.hbm_to_vmem [thread:$0]  %s1, 128, %s34, [#allocation3]
    $region9: #{tpu_custom_call.1} parent=1 // pred_fallthru
      _
    // Predicated region
    $region10: #{tpu_custom_call.1} parent=1 // pred_check
      _
    $region11: #{tpu_custom_call.1} parent=1 // pred_check_branch
      %38 = sbr.rel (0) target = $region13
    $region12: #{tpu_custom_call.1} parent=1 // pred_region
      _
    $region13: #{tpu_custom_call.1} parent=1 // pred_fallthru
      _
    // Predicated region
    $region14: #{tpu_custom_call.1} parent=1 // pred_check
      _
    $region15: #{tpu_custom_call.1} parent=1 // pred_check_branch
      %40 = sbr.rel (0) target = $region17
    $region16: #{tpu_custom_call.1} parent=1 // pred_region
      %s42 = ssub.s32 128, 128
      %43 = vsyncadd [#allocation6], %s42
      %s45 = sshll.u32 [#allocation5], 4
      %s46 = int_to_ptr.vmem [resolvable:$true] %s45
      %48 = dma.hbm_to_vmem [thread:$0]  %s3, 128, %s46, [#allocation6]
    $region17: #{tpu_custom_call.1} parent=1 // pred_fallthru
      _
    // Predicated region
    $region18: #{tpu_custom_call.1} parent=1 // pred_check
      _
    $region19: #{tpu_custom_call.1} parent=1 // pred_check_branch
      %50 = sbr.rel (0) target = $region21
    $region20: #{tpu_custom_call.1} parent=1 // pred_region
      _
    $region21: #{tpu_custom_call.1} parent=1 // pred_fallthru
      _
    // Predicated region
    $region22: #{tpu_custom_call.1} parent=1 // pred_check
      _
    $region23: #{tpu_custom_call.1} parent=1 // pred_check_branch
      %52 = sbr.rel (0) target = $region25
    $region24: #{tpu_custom_call.1} parent=1 // pred_region
      _
    $region25: #{tpu_custom_call.1} parent=1 // pred_fallthru
      _
    // Predicated region
    $region26: #{tpu_custom_call.1} parent=1 // pred_check
      _
    $region27: #{tpu_custom_call.1} parent=1 // pred_check_branch
      %54 = sbr.rel (0) target = $region29
    $region28: #{tpu_custom_call.1} parent=1 // pred_region
      _
    $region29: #{tpu_custom_call.1} parent=1 // pred_fallthru
      _
    // Predicated region
    $region30: #{tpu_custom_call.1} parent=1 // pred_check
      _
    $region31: #{tpu_custom_call.1} parent=1 // pred_check_branch
      %56 = sbr.rel (0) target = $region33
    $region32: #{tpu_custom_call.1} parent=1 // pred_region
      _
    $region33: #{tpu_custom_call.1} parent=1 // pred_fallthru
      _
    // Predicated region
    $region34: #{tpu_custom_call.1} parent=1 // pred_check
      _
    $region35: #{tpu_custom_call.1} parent=1 // pred_check_branch
      %58 = sbr.rel (0) target = $region37
    $region36: #{tpu_custom_call.1} parent=1 // pred_region
      _
    $region37: #{tpu_custom_call.1} parent=1 // pred_fallthru
      _
    // Predicated region
    $region38: #{tpu_custom_call.1} parent=1 // pred_check
      _
    $region39: #{tpu_custom_call.1} parent=1 // pred_check_branch
      %60 = sbr.rel (0) target = $region41
    $region40: #{tpu_custom_call.1} parent=1 // pred_region
      _
    $region41: #{tpu_custom_call.1} parent=1 // pred_fallthru
      _
    // Predicated region
    $region42: #{tpu_custom_call.1} parent=1 // pred_check
      _
    $region43: #{tpu_custom_call.1} parent=1 // pred_check_branch
      %62 = sbr.rel (0) target = $region45
    $region44: #{tpu_custom_call.1} parent=1 // pred_region
      _
    $region45: #{tpu_custom_call.1} parent=1 // pred_fallthru
      _
    // Predicated region
    $region46: #{tpu_custom_call.1} parent=1 // pred_check
      _
    $region47: #{tpu_custom_call.1} parent=1 // pred_check_branch
      %64 = sbr.rel (0) target = $region49
    $region48: #{tpu_custom_call.1} parent=1 // pred_region
      %s66 = ssub.s32 16, 16
      %67 = vsyncadd [#allocation6], %s66
      %s69 = sshll.u32 [#allocation7], 4
      %s70 = int_to_ptr.vmem [resolvable:$true] %s69
      %72 = dma.hbm_to_vmem [thread:$0]  %s11, 16, %s70, [#allocation6]
    $region49: #{tpu_custom_call.1} parent=1 // pred_fallthru
      _
    // Predicated region
    $region50: #{tpu_custom_call.1} parent=1 // pred_check
      _
    $region51: #{tpu_custom_call.1} parent=1 // pred_check_branch
      %74 = sbr.rel (0) target = $region53
    $region52: #{tpu_custom_call.1} parent=1 // pred_region
      %s76 = ssub.s32 1024, 1024
      %77 = vsyncadd [#allocation9], %s76
      %s78 = sshll.u32 [#allocation8], 4
      %s79 = int_to_ptr.vmem [resolvable:$true] %s78
      %84 = dma.hbm_to_vmem [thread:$0]  %s12, 1024, %s79, [#allocation9], 256, 256, 16
    $region53: #{tpu_custom_call.1} parent=1 // pred_fallthru
      _
    // Predicated region
    $region54: #{tpu_custom_call.1} parent=1 // pred_check
      _
    $region55: #{tpu_custom_call.1} parent=1 // pred_check_branch
      %86 = sbr.rel (0) target = $region57
    $region56: #{tpu_custom_call.1} parent=1 // pred_region
      _
    $region57: #{tpu_custom_call.1} parent=1 // pred_fallthru
      _
    // Predicated region
    $region58: #{tpu_custom_call.1} parent=1 // pred_check
      _
    $region59: #{tpu_custom_call.1} parent=1 // pred_check_branch
      %88 = sbr.rel (0) target = $region61
    $region60: #{tpu_custom_call.1} parent=1 // pred_region
      _
    $region61: #{tpu_custom_call.1} parent=1 // pred_fallthru
      _
    // Predicated region
    $region62: #{tpu_custom_call.1} parent=1 // pred_check
      _
    $region63: #{tpu_custom_call.1} parent=1 // pred_check_branch
      %90 = sbr.rel (0) target = $region65
    $region64: #{tpu_custom_call.1} parent=1 // pred_region
      _
    $region65: #{tpu_custom_call.1} parent=1 // pred_fallthru
      _
    // Predicated region
    $region66: #{tpu_custom_call.1} parent=1 // pred_check
      _
    $region67: #{tpu_custom_call.1} parent=1 // pred_check_branch
      %92 = sbr.rel (0) target = $region69
    $region68: #{tpu_custom_call.1} parent=1 // pred_region
      %93 = dma.done [#allocation3], 128
    $region69: #{tpu_custom_call.1} parent=1 // pred_fallthru
      _
    // Predicated region
    $region70: #{tpu_custom_call.1} parent=1 // pred_check
      _
    $region71: #{tpu_custom_call.1} parent=1 // pred_check_branch
      %95 = sbr.rel (0) target = $region73
    $region72: #{tpu_custom_call.1} parent=1 // pred_region
      %96 = dma.done [#allocation6], 128
    $region73: #{tpu_custom_call.1} parent=1 // pred_fallthru
      _
    // Predicated region
    $region74: #{tpu_custom_call.1} parent=1 // pred_check
      _
    $region75: #{tpu_custom_call.1} parent=1 // pred_check_branch
      %98 = sbr.rel (0) target = $region77
    $region76: #{tpu_custom_call.1} parent=1 // pred_region
      %99 = dma.done [#allocation6], 16
    $region77: #{tpu_custom_call.1} parent=1 // pred_fallthru
      _
    // Predicated region
    $region78: #{tpu_custom_call.1} parent=1 // pred_check
      _
    $region79: #{tpu_custom_call.1} parent=1 // pred_check_branch
      %101 = sbr.rel (0) target = $region81
    $region80: #{tpu_custom_call.1} parent=1 // pred_region
      %102 = dma.done [#allocation9], 1024
    $region81: #{tpu_custom_call.1} parent=1 // pred_fallthru
      _
    %v103 = vld [vmem:[%s0] sm:$0xff]
    %v104 = vld [vmem:[#allocation2] sm:$0xff]
    %v105 = vld [vmem:[%s2] sm:$0xff]
    %v106 = vld [vmem:[%s2 + $0x8] sm:$0xff]
    %vm107 = vcmask 130048
    %v109 = vsel %vm107, %v103, 0
    %111 = vmatprep.subr.mxu0 0.0
    %112 = vmatpush1.msra.mxu0 0.0
    %113 = vmatprep.subr.mxu0 0.0
    %114 = vmatpush1.msra.mxu0 0.0
    %115 = vmatprep.subr.mxu0 0.0
    %116 = vmatpush1.msra.mxu0 0.0
    %117 = vmatprep.subr.mxu0 0.0
    %118 = vmatpush1.msra.mxu0 0.0
    %119 = vmatprep.subr.mxu0 0.0
    %120 = vmatpush1.msra.mxu0 0.0
    %121 = vmatprep.subr.mxu0 0.0
    %122 = vmatpush1.msra.mxu0 0.0
    %123 = vmatprep.subr.mxu0 0.0
    %124 = vmatpush1.msra.mxu0 0.0
    %125 = vmatprep.subr.mxu0 0.0
    %126 = vmatpush1.msra.mxu0 0.0
    %127 = vmatprep.subr.mxu0 0.0
    %128 = vmatpush1.msra.mxu0 0.0
    %129 = vmatprep.subr.mxu0 0.0
    %130 = vmatpush1.msra.mxu0 0.0
    %131 = vmatprep.subr.mxu0 0.0
    %132 = vmatpush1.msra.mxu0 0.0
    %133 = vmatprep.subr.mxu0 0.0
    %134 = vmatpush1.msra.mxu0 0.0
    %135 = vmatprep.subr.mxu0 0.0
    %136 = vmatpush1.msra.mxu0 0.0
    %137 = vmatprep.subr.mxu0 0.0
    %138 = vmatpush1.msra.mxu0 0.0
    %139 = vmatprep.subr.mxu0 0.0
    %140 = vmatpush1.msra.mxu0 %v106
    %141 = vmatprep.subr.mxu0 0.0
    %142 = vmatpush1.msra.mxu0 %v105
    %143 = vmatprep.subr.mxu0 0.0
    %144 = vmatpush2.msra.mxu0 0.0
    %145 = vmatprep.subr.mxu0 0.0
    %146 = vmatpush2.msra.mxu0 0.0
    %147 = vmatprep.subr.mxu0 0.0
    %148 = vmatpush2.msra.mxu0 0.0
    %149 = vmatprep.subr.mxu0 0.0
    %150 = vmatpush2.msra.mxu0 0.0
    %151 = vmatprep.subr.mxu0 0.0
    %152 = vmatpush2.msra.mxu0 0.0
    %153 = vmatprep.subr.mxu0 0.0
    %154 = vmatpush2.msra.mxu0 0.0
    %155 = vmatprep.subr.mxu0 0.0
    %156 = vmatpush2.msra.mxu0 0.0
    %157 = vmatprep.subr.mxu0 0.0
    %158 = vmatpush2.msra.mxu0 0.0
    %159 = vmatprep.subr.mxu0 0.0
    %160 = vmatpush2.msra.mxu0 0.0
    %161 = vmatprep.subr.mxu0 0.0
    %162 = vmatpush2.msra.mxu0 0.0
    %163 = vmatprep.subr.mxu0 0.0
    %164 = vmatpush2.msra.mxu0 0.0
    %165 = vmatprep.subr.mxu0 0.0
    %166 = vmatpush2.msra.mxu0 0.0
    %167 = vmatprep.subr.mxu0 0.0
    %168 = vmatpush2.msra.mxu0 0.0
    %169 = vmatprep.subr.mxu0 0.0
    %170 = vmatpush2.msra.mxu0 0.0
    %171 = vmatprep.subr.mxu0 0.0
    %172 = vmatpush2.msra.mxu0 0.0
    %173 = vmatprep.subr.mxu0 0.0
    %174 = vmatpush2.msra.mxu0 0.0
    %175 = vmatprep.mubr.f32.mxu0 0.0
    %176 = vmatmul.mubr.f32.gmra.mxu0 %v109
    %v177 = vpop.f32.mrf.mxu0
    %v178 = vadd.f32 0.0, %v177
    %v179 = vpop.f32.mrf.mxu0
    %180 = vdwg.mxu0
    %v181 = vld [vmem:[#allocation5] sm:$0xff]
    %vm182 = vcmask 64512
    %v184 = vsel %vm182, %v104, 0
    %186 = vmatprep.subr.mxu0 0.0
    %187 = vmatpush1.msra.mxu0 0.0
    %188 = vmatprep.subr.mxu0 0.0
    %189 = vmatpush1.msra.mxu0 0.0
    %190 = vmatprep.subr.mxu0 0.0
    %191 = vmatpush1.msra.mxu0 0.0
    %192 = vmatprep.subr.mxu0 0.0
    %193 = vmatpush1.msra.mxu0 0.0
    %194 = vmatprep.subr.mxu0 0.0
    %195 = vmatpush1.msra.mxu0 0.0
    %196 = vmatprep.subr.mxu0 0.0
    %197 = vmatpush1.msra.mxu0 0.0
    %198 = vmatprep.subr.mxu0 0.0
    %199 = vmatpush1.msra.mxu0 0.0
    %200 = vmatprep.subr.mxu0 0.0
    %201 = vmatpush1.msra.mxu0 0.0
    %202 = vmatprep.subr.mxu0 0.0
    %203 = vmatpush1.msra.mxu0 0.0
    %204 = vmatprep.subr.mxu0 0.0
    %205 = vmatpush1.msra.mxu0 0.0
    %206 = vmatprep.subr.mxu0 0.0
    %207 = vmatpush1.msra.mxu0 0.0
    %208 = vmatprep.subr.mxu0 0.0
    %209 = vmatpush1.msra.mxu0 0.0
    %210 = vmatprep.subr.mxu0 0.0
    %211 = vmatpush1.msra.mxu0 0.0
    %212 = vmatprep.subr.mxu0 0.0
    %213 = vmatpush1.msra.mxu0 0.0
    %214 = vmatprep.subr.mxu0 0.0
    %215 = vmatpush1.msra.mxu0 0.0
    %216 = vmatprep.subr.mxu0 0.0
    %217 = vmatpush1.msra.mxu0 %v181
    %218 = vmatprep.subr.mxu0 0.0
    %219 = vmatpush2.msra.mxu0 0.0
    %220 = vmatprep.subr.mxu0 0.0
    %221 = vmatpush2.msra.mxu0 0.0
    %222 = vmatprep.subr.mxu0 0.0
    %223 = vmatpush2.msra.mxu0 0.0
    %224 = vmatprep.subr.mxu0 0.0
    %225 = vmatpush2.msra.mxu0 0.0
    %226 = vmatprep.subr.mxu0 0.0
    %227 = vmatpush2.msra.mxu0 0.0
    %228 = vmatprep.subr.mxu0 0.0
    %229 = vmatpush2.msra.mxu0 0.0
    %230 = vmatprep.subr.mxu0 0.0
    %231 = vmatpush2.msra.mxu0 0.0
    %232 = vmatprep.subr.mxu0 0.0
    %233 = vmatpush2.msra.mxu0 0.0
    %234 = vmatprep.subr.mxu0 0.0
    %235 = vmatpush2.msra.mxu0 0.0
    %236 = vmatprep.subr.mxu0 0.0
    %237 = vmatpush2.msra.mxu0 0.0
    %238 = vmatprep.subr.mxu0 0.0
    %239 = vmatpush2.msra.mxu0 0.0
    %240 = vmatprep.subr.mxu0 0.0
    %241 = vmatpush2.msra.mxu0 0.0
    %242 = vmatprep.subr.mxu0 0.0
    %243 = vmatpush2.msra.mxu0 0.0
    %244 = vmatprep.subr.mxu0 0.0
    %245 = vmatpush2.msra.mxu0 0.0
    %246 = vmatprep.subr.mxu0 0.0
    %247 = vmatpush2.msra.mxu0 0.0
    %248 = vmatprep.subr.mxu0 0.0
    %249 = vmatpush2.msra.mxu0 0.0
    %250 = vmatprep.mubr.f32.mxu0 0.0
    %251 = vmatmul.mubr.f32.gmra.mxu0 %v184
    %v252 = vpop.f32.mrf.mxu0
    %v253 = vadd.f32 0.0, %v252
    %v254 = vpop.f32.mrf.mxu0
    %255 = vdwg.mxu0
    %v256 = vmul.f32 %v178, %v253
    %v257 = vld [vmem:[%s4] sm:$0xff]
    %v258 = vld [vmem:[%s4 + $0x8] sm:$0xff]
    %v259 = vld [vmem:[%s4 + $0x10] sm:$0xff]
    %v260 = vld [vmem:[%s4 + $0x18] sm:$0xff]
    %v261 = vld [vmem:[%s4 + $0x20] sm:$0xff]
    %v262 = vld [vmem:[%s4 + $0x28] sm:$0xff]
    %v263 = vld [vmem:[%s4 + $0x30] sm:$0xff]
    %v264 = vld [vmem:[%s4 + $0x38] sm:$0xff]
    %v265 = vld [vmem:[%s4 + $0x40] sm:$0xff]
    %v266 = vld [vmem:[%s4 + $0x48] sm:$0xff]
    %v267 = vld [vmem:[%s4 + $0x50] sm:$0xff]
    %v268 = vld [vmem:[%s4 + $0x58] sm:$0xff]
    %v269 = vld [vmem:[%s4 + $0x60] sm:$0xff]
    %v270 = vld [vmem:[%s4 + $0x68] sm:$0xff]
    %v271 = vld [vmem:[%s4 + $0x70] sm:$0xff]
    %v272 = vld [vmem:[%s4 + $0x78] sm:$0xff]
    %v273 = vld [vmem:[%s4 + $0x80] sm:$0xff]
    %v274 = vld [vmem:[%s4 + $0x88] sm:$0xff]
    %v275 = vld [vmem:[%s4 + $0x90] sm:$0xff]
    %v276 = vld [vmem:[%s4 + $0x98] sm:$0xff]
    %v277 = vld [vmem:[%s4 + $0xa0] sm:$0xff]
    %v278 = vld [vmem:[%s4 + $0xa8] sm:$0xff]
    %v279 = vld [vmem:[%s4 + $0xb0] sm:$0xff]
    %v280 = vld [vmem:[%s4 + $0xb8] sm:$0xff]
    %v281 = vld [vmem:[%s4 + $0xc0] sm:$0xff]
    %v282 = vld [vmem:[%s4 + $0xc8] sm:$0xff]
    %v283 = vld [vmem:[%s4 + $0xd0] sm:$0xff]
    %v284 = vld [vmem:[%s4 + $0xd8] sm:$0xff]
    %v285 = vld [vmem:[%s4 + $0xe0] sm:$0xff]
    %v286 = vld [vmem:[%s4 + $0xe8] sm:$0xff]
    %v287 = vld [vmem:[%s4 + $0xf0] sm:$0xff]
    %v288 = vld [vmem:[%s4 + $0xf8] sm:$0xff]
    %v289 = vld [vmem:[%s5] sm:$0x3]
    %v291 = vlaneseq
    %v292 = vshrl.u32 %v291, 7
    %v293 = vsub.s32 0, %v292
    %v294 = vrot.slane %v289, %v293
    %v295 = vlaneseq
    %v296 = vshrl.u32 %v295, 7
    %v297 = vsub.s32 1, %v296
    %v298 = vrot.slane %v289, %v297
    %301 = vmatprep.subr.mxu0 %v288
    %302 = vmatpush1.msra.mxu0 %v287
    %303 = vmatprep.subr.mxu0 %v286
    %304 = vmatpush1.msra.mxu0 %v285
    %305 = vmatprep.subr.mxu0 %v284
    %306 = vmatpush1.msra.mxu0 %v283
    %307 = vmatprep.subr.mxu0 %v282
    %308 = vmatpush1.msra.mxu0 %v281
    %309 = vmatprep.subr.mxu0 %v280
    %310 = vmatpush1.msra.mxu0 %v279
    %311 = vmatprep.subr.mxu0 %v278
    %312 = vmatpush1.msra.mxu0 %v277
    %313 = vmatprep.subr.mxu0 %v276
    %314 = vmatpush1.msra.mxu0 %v275
    %315 = vmatprep.subr.mxu0 %v274
    %316 = vmatpush1.msra.mxu0 %v273
    %317 = vmatprep.subr.mxu0 %v272
    %318 = vmatpush1.msra.mxu0 %v271
    %319 = vmatprep.subr.mxu0 %v270
    %320 = vmatpush1.msra.mxu0 %v269
    %321 = vmatprep.subr.mxu0 %v268
    %322 = vmatpush1.msra.mxu0 %v267
    %323 = vmatprep.subr.mxu0 %v266
    %324 = vmatpush1.msra.mxu0 %v265
    %325 = vmatprep.subr.mxu0 %v264
    %326 = vmatpush1.msra.mxu0 %v263
    %327 = vmatprep.subr.mxu0 %v262
    %328 = vmatpush1.msra.mxu0 %v261
    %329 = vmatprep.subr.mxu0 %v260
    %330 = vmatpush1.msra.mxu0 %v259
    %331 = vmatprep.subr.mxu0 %v258
    %332 = vmatpush1.msra.mxu0 %v257
    %333 = vmatprep.subr.mxu0 0.0
    %334 = vmatpush2.msra.mxu0 0.0
    %335 = vmatprep.subr.mxu0 0.0
    %336 = vmatpush2.msra.mxu0 0.0
    %337 = vmatprep.subr.mxu0 0.0
    %338 = vmatpush2.msra.mxu0 0.0
    %339 = vmatprep.subr.mxu0 0.0
    %340 = vmatpush2.msra.mxu0 0.0
    %341 = vmatprep.subr.mxu0 0.0
    %342 = vmatpush2.msra.mxu0 0.0
    %343 = vmatprep.subr.mxu0 0.0
    %344 = vmatpush2.msra.mxu0 0.0
    %345 = vmatprep.subr.mxu0 0.0
    %346 = vmatpush2.msra.mxu0 0.0
    %347 = vmatprep.subr.mxu0 0.0
    %348 = vmatpush2.msra.mxu0 0.0
    %349 = vmatprep.subr.mxu0 0.0
    %350 = vmatpush2.msra.mxu0 0.0
    %351 = vmatprep.subr.mxu0 0.0
    %352 = vmatpush2.msra.mxu0 0.0
    %353 = vmatprep.subr.mxu0 0.0
    %354 = vmatpush2.msra.mxu0 0.0
    %355 = vmatprep.subr.mxu0 0.0
    %356 = vmatpush2.msra.mxu0 0.0
    %357 = vmatprep.subr.mxu0 0.0
    %358 = vmatpush2.msra.mxu0 0.0
    %359 = vmatprep.subr.mxu0 0.0
    %360 = vmatpush2.msra.mxu0 0.0
    %361 = vmatprep.subr.mxu0 0.0
    %362 = vmatpush2.msra.mxu0 0.0
    %363 = vmatprep.subr.mxu0 0.0
    %364 = vmatpush2.msra.mxu0 0.0
    %365 = vmatprep.mubr.f32.mxu0 0.0
    %366 = vmatmul.mubr.f32.gmra.mxu0 %v256
    %v367 = vpop.f32.mrf.mxu0
    %v368 = vadd.f32 %v294, %v367
    %v369 = vpop.f32.mrf.mxu0
    %v370 = vadd.f32 %v298, %v369
    %371 = vdwg.mxu0
    %vm372 = vcmp.gt.f32.partialorder %v368, 0.0
    %vm373 = vcmp.gt.f32.partialorder %v370, 0.0
    %v374 = vmul.f32 %v368, 0.01
    %v375 = vmul.f32 %v370, 0.01
    %v376 = vsel %vm372, %v368, %v374
    %v377 = vsel %vm373, %v370, %v375
    %v378 = vld [vmem:[%s6] sm:$0xff]
    %v379 = vld [vmem:[%s6 + $0x8] sm:$0xff]
    %v380 = vld [vmem:[%s6 + $0x10] sm:$0xff]
    %v381 = vld [vmem:[%s6 + $0x18] sm:$0xff]
    %v382 = vld [vmem:[%s6 + $0x20] sm:$0xff]
    %v383 = vld [vmem:[%s6 + $0x28] sm:$0xff]
    %v384 = vld [vmem:[%s6 + $0x30] sm:$0xff]
    %v385 = vld [vmem:[%s6 + $0x38] sm:$0xff]
    %v386 = vld [vmem:[%s6 + $0x40] sm:$0xff]
    %v387 = vld [vmem:[%s6 + $0x48] sm:$0xff]
    %v388 = vld [vmem:[%s6 + $0x50] sm:$0xff]
    %v389 = vld [vmem:[%s6 + $0x58] sm:$0xff]
    %v390 = vld [vmem:[%s6 + $0x60] sm:$0xff]
    %v391 = vld [vmem:[%s6 + $0x68] sm:$0xff]
    %v392 = vld [vmem:[%s6 + $0x70] sm:$0xff]
    %v393 = vld [vmem:[%s6 + $0x78] sm:$0xff]
    %v394 = vld [vmem:[%s6 + $0x80] sm:$0xff]
    %v395 = vld [vmem:[%s6 + $0x88] sm:$0xff]
    %v396 = vld [vmem:[%s6 + $0x90] sm:$0xff]
    %v397 = vld [vmem:[%s6 + $0x98] sm:$0xff]
    %v398 = vld [vmem:[%s6 + $0xa0] sm:$0xff]
    %v399 = vld [vmem:[%s6 + $0xa8] sm:$0xff]
    %v400 = vld [vmem:[%s6 + $0xb0] sm:$0xff]
    %v401 = vld [vmem:[%s6 + $0xb8] sm:$0xff]
    %v402 = vld [vmem:[%s6 + $0xc0] sm:$0xff]
    %v403 = vld [vmem:[%s6 + $0xc8] sm:$0xff]
    %v404 = vld [vmem:[%s6 + $0xd0] sm:$0xff]
    %v405 = vld [vmem:[%s6 + $0xd8] sm:$0xff]
    %v406 = vld [vmem:[%s6 + $0xe0] sm:$0xff]
    %v407 = vld [vmem:[%s6 + $0xe8] sm:$0xff]
    %v408 = vld [vmem:[%s6 + $0xf0] sm:$0xff]
    %v409 = vld [vmem:[%s6 + $0xf8] sm:$0xff]
    %v410 = vld [vmem:[%s7] sm:$0x1]
    %v412 = vlaneseq
    %v413 = vshrl.u32 %v412, 7
    %v414 = vsub.s32 0, %v413
    %v415 = vrot.slane %v410, %v414
    %417 = vmatprep.subr.mxu0 0.0
    %418 = vmatpush1.msra.mxu0 %v393
    %419 = vmatprep.subr.mxu0 0.0
    %420 = vmatpush1.msra.mxu0 %v392
    %421 = vmatprep.subr.mxu0 0.0
    %422 = vmatpush1.msra.mxu0 %v391
    %423 = vmatprep.subr.mxu0 0.0
    %424 = vmatpush1.msra.mxu0 %v390
    %425 = vmatprep.subr.mxu0 0.0
    %426 = vmatpush1.msra.mxu0 %v389
    %427 = vmatprep.subr.mxu0 0.0
    %428 = vmatpush1.msra.mxu0 %v388
    %429 = vmatprep.subr.mxu0 0.0
    %430 = vmatpush1.msra.mxu0 %v387
    %431 = vmatprep.subr.mxu0 0.0
    %432 = vmatpush1.msra.mxu0 %v386
    %433 = vmatprep.subr.mxu0 0.0
    %434 = vmatpush1.msra.mxu0 %v385
    %435 = vmatprep.subr.mxu0 0.0
    %436 = vmatpush1.msra.mxu0 %v384
    %437 = vmatprep.subr.mxu0 0.0
    %438 = vmatpush1.msra.mxu0 %v383
    %439 = vmatprep.subr.mxu0 0.0
    %440 = vmatpush1.msra.mxu0 %v382
    %441 = vmatprep.subr.mxu0 0.0
    %442 = vmatpush1.msra.mxu0 %v381
    %443 = vmatprep.subr.mxu0 0.0
    %444 = vmatpush1.msra.mxu0 %v380
    %445 = vmatprep.subr.mxu0 0.0
    %446 = vmatpush1.msra.mxu0 %v379
    %447 = vmatprep.subr.mxu0 0.0
    %448 = vmatpush1.msra.mxu0 %v378
    %449 = vmatprep.subr.mxu0 0.0
    %450 = vmatpush2.msra.mxu0 %v409
    %451 = vmatprep.subr.mxu0 0.0
    %452 = vmatpush2.msra.mxu0 %v408
    %453 = vmatprep.subr.mxu0 0.0
    %454 = vmatpush2.msra.mxu0 %v407
    %455 = vmatprep.subr.mxu0 0.0
    %456 = vmatpush2.msra.mxu0 %v406
    %457 = vmatprep.subr.mxu0 0.0
    %458 = vmatpush2.msra.mxu0 %v405
    %459 = vmatprep.subr.mxu0 0.0
    %460 = vmatpush2.msra.mxu0 %v404
    %461 = vmatprep.subr.mxu0 0.0
    %462 = vmatpush2.msra.mxu0 %v403
    %463 = vmatprep.subr.mxu0 0.0
    %464 = vmatpush2.msra.mxu0 %v402
    %465 = vmatprep.subr.mxu0 0.0
    %466 = vmatpush2.msra.mxu0 %v401
    %467 = vmatprep.subr.mxu0 0.0
    %468 = vmatpush2.msra.mxu0 %v400
    %469 = vmatprep.subr.mxu0 0.0
    %470 = vmatpush2.msra.mxu0 %v399
    %471 = vmatprep.subr.mxu0 0.0
    %472 = vmatpush2.msra.mxu0 %v398
    %473 = vmatprep.subr.mxu0 0.0
    %474 = vmatpush2.msra.mxu0 %v397
    %475 = vmatprep.subr.mxu0 0.0
    %476 = vmatpush2.msra.mxu0 %v396
    %477 = vmatprep.subr.mxu0 0.0
    %478 = vmatpush2.msra.mxu0 %v395
    %479 = vmatprep.subr.mxu0 0.0
    %480 = vmatpush2.msra.mxu0 %v394
    %481 = vmatprep.mubr.f32.mxu0 %v377
    %482 = vmatmul.mubr.f32.gmra.mxu0 %v376
    %v483 = vpop.f32.mrf.mxu0
    %v484 = vadd.f32 %v415, %v483
    %v485 = vpop.f32.mrf.mxu0
    %486 = vdwg.mxu0
    %vm487 = vcmp.gt.f32.partialorder %v484, 0.0
    %v488 = vmul.f32 %v484, 0.01
    %v489 = vsel %vm487, %v484, %v488
    %v490 = vld [vmem:[%s8] sm:$0xff]
    %v491 = vld [vmem:[%s8 + $0x8] sm:$0xff]
    %v492 = vld [vmem:[%s8 + $0x10] sm:$0xff]
    %v493 = vld [vmem:[%s8 + $0x18] sm:$0xff]
    %v494 = vld [vmem:[%s8 + $0x20] sm:$0xff]
    %v495 = vld [vmem:[%s8 + $0x28] sm:$0xff]
    %v496 = vld [vmem:[%s8 + $0x30] sm:$0xff]
    %v497 = vld [vmem:[%s8 + $0x38] sm:$0xff]
    %v498 = vld [vmem:[%s8 + $0x40] sm:$0xff]
    %v499 = vld [vmem:[%s8 + $0x48] sm:$0xff]
    %v500 = vld [vmem:[%s8 + $0x50] sm:$0xff]
    %v501 = vld [vmem:[%s8 + $0x58] sm:$0xff]
    %v502 = vld [vmem:[%s8 + $0x60] sm:$0xff]
    %v503 = vld [vmem:[%s8 + $0x68] sm:$0xff]
    %v504 = vld [vmem:[%s8 + $0x70] sm:$0xff]
    %v505 = vld [vmem:[%s8 + $0x78] sm:$0xff]
    %v506 = vld [vmem:[%s9] sm:$0x1]
    %v508 = vlaneseq
    %v509 = vshrl.u32 %v508, 7
    %v510 = vsub.s32 0, %v509
    %v511 = vrot.slane %v506, %v510
    %513 = vmatprep.subr.mxu0 0.0
    %514 = vmatpush1.msra.mxu0 %v505
    %515 = vmatprep.subr.mxu0 0.0
    %516 = vmatpush1.msra.mxu0 %v504
    %517 = vmatprep.subr.mxu0 0.0
    %518 = vmatpush1.msra.mxu0 %v503
    %519 = vmatprep.subr.mxu0 0.0
    %520 = vmatpush1.msra.mxu0 %v502
    %521 = vmatprep.subr.mxu0 0.0
    %522 = vmatpush1.msra.mxu0 %v501
    %523 = vmatprep.subr.mxu0 0.0
    %524 = vmatpush1.msra.mxu0 %v500
    %525 = vmatprep.subr.mxu0 0.0
    %526 = vmatpush1.msra.mxu0 %v499
    %527 = vmatprep.subr.mxu0 0.0
    %528 = vmatpush1.msra.mxu0 %v498
    %529 = vmatprep.subr.mxu0 0.0
    %530 = vmatpush1.msra.mxu0 %v497
    %531 = vmatprep.subr.mxu0 0.0
    %532 = vmatpush1.msra.mxu0 %v496
    %533 = vmatprep.subr.mxu0 0.0
    %534 = vmatpush1.msra.mxu0 %v495
    %535 = vmatprep.subr.mxu0 0.0
    %536 = vmatpush1.msra.mxu0 %v494
    %537 = vmatprep.subr.mxu0 0.0
    %538 = vmatpush1.msra.mxu0 %v493
    %539 = vmatprep.subr.mxu0 0.0
    %540 = vmatpush1.msra.mxu0 %v492
    %541 = vmatprep.subr.mxu0 0.0
    %542 = vmatpush1.msra.mxu0 %v491
    %543 = vmatprep.subr.mxu0 0.0
    %544 = vmatpush1.msra.mxu0 %v490
    %545 = vmatprep.subr.mxu0 0.0
    %546 = vmatpush2.msra.mxu0 0.0
    %547 = vmatprep.subr.mxu0 0.0
    %548 = vmatpush2.msra.mxu0 0.0
    %549 = vmatprep.subr.mxu0 0.0
    %550 = vmatpush2.msra.mxu0 0.0
    %551 = vmatprep.subr.mxu0 0.0
    %552 = vmatpush2.msra.mxu0 0.0
    %553 = vmatprep.subr.mxu0 0.0
    %554 = vmatpush2.msra.mxu0 0.0
    %555 = vmatprep.subr.mxu0 0.0
    %556 = vmatpush2.msra.mxu0 0.0
    %557 = vmatprep.subr.mxu0 0.0
    %558 = vmatpush2.msra.mxu0 0.0
    %559 = vmatprep.subr.mxu0 0.0
    %560 = vmatpush2.msra.mxu0 0.0
    %561 = vmatprep.subr.mxu0 0.0
    %562 = vmatpush2.msra.mxu0 0.0
    %563 = vmatprep.subr.mxu0 0.0
    %564 = vmatpush2.msra.mxu0 0.0
    %565 = vmatprep.subr.mxu0 0.0
    %566 = vmatpush2.msra.mxu0 0.0
    %567 = vmatprep.subr.mxu0 0.0
    %568 = vmatpush2.msra.mxu0 0.0
    %569 = vmatprep.subr.mxu0 0.0
    %570 = vmatpush2.msra.mxu0 0.0
    %571 = vmatprep.subr.mxu0 0.0
    %572 = vmatpush2.msra.mxu0 0.0
    %573 = vmatprep.subr.mxu0 0.0
    %574 = vmatpush2.msra.mxu0 0.0
    %575 = vmatprep.subr.mxu0 0.0
    %576 = vmatpush2.msra.mxu0 0.0
    %577 = vmatprep.mubr.f32.mxu0 0.0
    %578 = vmatmul.mubr.f32.gmra.mxu0 %v489
    %v579 = vpop.f32.mrf.mxu0
    %v580 = vadd.f32 %v511, %v579
    %v581 = vpop.f32.mrf.mxu0
    %582 = vdwg.mxu0
    %vm583 = vcmp.gt.f32.partialorder %v580, 0.0
    %v584 = vmul.f32 %v580, 0.01
    %v585 = vsel %vm583, %v580, %v584
    %v586 = vld [vmem:[%s10] sm:$0xff]
    %v587 = vld [vmem:[%s10 + $0x8] sm:$0xff]
    %v588 = vld [vmem:[%s10 + $0x10] sm:$0xff]
    %v589 = vld [vmem:[%s10 + $0x18] sm:$0xff]
    %v590 = vld [vmem:[%s10 + $0x20] sm:$0xff]
    %v591 = vld [vmem:[%s10 + $0x28] sm:$0xff]
    %v592 = vld [vmem:[%s10 + $0x30] sm:$0xff]
    %v593 = vld [vmem:[%s10 + $0x38] sm:$0xff]
    %v594 = vld [vmem:[#allocation7] sm:$0x1]
    %v596 = vlaneseq
    %v597 = vshrl.u32 %v596, 7
    %v598 = vsub.s32 0, %v597
    %v599 = vrot.slane %v594, %v598
    %vm601 = vcmask 523264
    %v603 = vsel %vm601, %v585, 0
    %605 = vmatprep.subr.mxu0 0.0
    %606 = vmatpush1.msra.mxu0 0.0
    %607 = vmatprep.subr.mxu0 0.0
    %608 = vmatpush1.msra.mxu0 0.0
    %609 = vmatprep.subr.mxu0 0.0
    %610 = vmatpush1.msra.mxu0 0.0
    %611 = vmatprep.subr.mxu0 0.0
    %612 = vmatpush1.msra.mxu0 0.0
    %613 = vmatprep.subr.mxu0 0.0
    %614 = vmatpush1.msra.mxu0 0.0
    %615 = vmatprep.subr.mxu0 0.0
    %616 = vmatpush1.msra.mxu0 0.0
    %617 = vmatprep.subr.mxu0 0.0
    %618 = vmatpush1.msra.mxu0 0.0
    %619 = vmatprep.subr.mxu0 0.0
    %620 = vmatpush1.msra.mxu0 0.0
    %621 = vmatprep.subr.mxu0 0.0
    %622 = vmatpush1.msra.mxu0 %v593
    %623 = vmatprep.subr.mxu0 0.0
    %624 = vmatpush1.msra.mxu0 %v592
    %625 = vmatprep.subr.mxu0 0.0
    %626 = vmatpush1.msra.mxu0 %v591
    %627 = vmatprep.subr.mxu0 0.0
    %628 = vmatpush1.msra.mxu0 %v590
    %629 = vmatprep.subr.mxu0 0.0
    %630 = vmatpush1.msra.mxu0 %v589
    %631 = vmatprep.subr.mxu0 0.0
    %632 = vmatpush1.msra.mxu0 %v588
    %633 = vmatprep.subr.mxu0 0.0
    %634 = vmatpush1.msra.mxu0 %v587
    %635 = vmatprep.subr.mxu0 0.0
    %636 = vmatpush1.msra.mxu0 %v586
    %637 = vmatprep.subr.mxu0 0.0
    %638 = vmatpush2.msra.mxu0 0.0
    %639 = vmatprep.subr.mxu0 0.0
    %640 = vmatpush2.msra.mxu0 0.0
    %641 = vmatprep.subr.mxu0 0.0
    %642 = vmatpush2.msra.mxu0 0.0
    %643 = vmatprep.subr.mxu0 0.0
    %644 = vmatpush2.msra.mxu0 0.0
    %645 = vmatprep.subr.mxu0 0.0
    %646 = vmatpush2.msra.mxu0 0.0
    %647 = vmatprep.subr.mxu0 0.0
    %648 = vmatpush2.msra.mxu0 0.0
    %649 = vmatprep.subr.mxu0 0.0
    %650 = vmatpush2.msra.mxu0 0.0
    %651 = vmatprep.subr.mxu0 0.0
    %652 = vmatpush2.msra.mxu0 0.0
    %653 = vmatprep.subr.mxu0 0.0
    %654 = vmatpush2.msra.mxu0 0.0
    %655 = vmatprep.subr.mxu0 0.0
    %656 = vmatpush2.msra.mxu0 0.0
    %657 = vmatprep.subr.mxu0 0.0
    %658 = vmatpush2.msra.mxu0 0.0
    %659 = vmatprep.subr.mxu0 0.0
    %660 = vmatpush2.msra.mxu0 0.0
    %661 = vmatprep.subr.mxu0 0.0
    %662 = vmatpush2.msra.mxu0 0.0
    %663 = vmatprep.subr.mxu0 0.0
    %664 = vmatpush2.msra.mxu0 0.0
    %665 = vmatprep.subr.mxu0 0.0
    %666 = vmatpush2.msra.mxu0 0.0
    %667 = vmatprep.subr.mxu0 0.0
    %668 = vmatpush2.msra.mxu0 0.0
    %669 = vmatprep.mubr.f32.mxu0 0.0
    %670 = vmatmul.mubr.f32.gmra.mxu0 %v603
    %v671 = vpop.f32.mrf.mxu0
    %v672 = vadd.f32 %v599, %v671
    %v673 = vpop.f32.mrf.mxu0
    %674 = vdwg.mxu0
    %vm675 = vcmp.gt.f32.partialorder %v672, 0.0
    %v676 = vmul.f32 %v672, 0.01
    %v677 = vsel %vm675, %v672, %v676
    %v678 = vld [vmem:[#allocation8] sm:$0xff]
    %v679 = vld [vmem:[#allocation8 + $0x8] sm:$0xff]
    %v680 = vld [vmem:[#allocation8 + $0x10] sm:$0xff]
    %v681 = vld [vmem:[#allocation8 + $0x18] sm:$0xff]
    %v682 = vld [vmem:[#allocation8 + $0x20] sm:$0xff]
    %v683 = vld [vmem:[#allocation8 + $0x28] sm:$0xff]
    %v684 = vld [vmem:[#allocation8 + $0x30] sm:$0xff]
    %v685 = vld [vmem:[#allocation8 + $0x38] sm:$0xff]
    %v686 = vld [vmem:[%s13] sm:$0x3]
    %v688 = vlaneseq
    %v689 = vshrl.u32 %v688, 7
    %v690 = vsub.s32 0, %v689
    %v691 = vrot.slane %v686, %v690
    %v692 = vlaneseq
    %v693 = vshrl.u32 %v692, 7
    %v694 = vsub.s32 1, %v693
    %v695 = vrot.slane %v686, %v694
    %vm698 = vcmask 261120
    %v700 = vsel %vm698, %v677, 0
    %702 = vmatprep.subr.mxu0 0.0
    %703 = vmatpush1.msra.mxu0 0.0
    %704 = vmatprep.subr.mxu0 0.0
    %705 = vmatpush1.msra.mxu0 0.0
    %706 = vmatprep.subr.mxu0 0.0
    %707 = vmatpush1.msra.mxu0 0.0
    %708 = vmatprep.subr.mxu0 0.0
    %709 = vmatpush1.msra.mxu0 0.0
    %710 = vmatprep.subr.mxu0 0.0
    %711 = vmatpush1.msra.mxu0 0.0
    %712 = vmatprep.subr.mxu0 0.0
    %713 = vmatpush1.msra.mxu0 0.0
    %714 = vmatprep.subr.mxu0 0.0
    %715 = vmatpush1.msra.mxu0 0.0
    %716 = vmatprep.subr.mxu0 0.0
    %717 = vmatpush1.msra.mxu0 0.0
    %718 = vmatprep.subr.mxu0 0.0
    %719 = vmatpush1.msra.mxu0 0.0
    %720 = vmatprep.subr.mxu0 0.0
    %721 = vmatpush1.msra.mxu0 0.0
    %722 = vmatprep.subr.mxu0 0.0
    %723 = vmatpush1.msra.mxu0 0.0
    %724 = vmatprep.subr.mxu0 0.0
    %725 = vmatpush1.msra.mxu0 0.0
    %726 = vmatprep.subr.mxu0 %v685
    %727 = vmatpush1.msra.mxu0 %v684
    %728 = vmatprep.subr.mxu0 %v683
    %729 = vmatpush1.msra.mxu0 %v682
    %730 = vmatprep.subr.mxu0 %v681
    %731 = vmatpush1.msra.mxu0 %v680
    %732 = vmatprep.subr.mxu0 %v679
    %733 = vmatpush1.msra.mxu0 %v678
    %734 = vmatprep.subr.mxu0 0.0
    %735 = vmatpush2.msra.mxu0 0.0
    %736 = vmatprep.subr.mxu0 0.0
    %737 = vmatpush2.msra.mxu0 0.0
    %738 = vmatprep.subr.mxu0 0.0
    %739 = vmatpush2.msra.mxu0 0.0
    %740 = vmatprep.subr.mxu0 0.0
    %741 = vmatpush2.msra.mxu0 0.0
    %742 = vmatprep.subr.mxu0 0.0
    %743 = vmatpush2.msra.mxu0 0.0
    %744 = vmatprep.subr.mxu0 0.0
    %745 = vmatpush2.msra.mxu0 0.0
    %746 = vmatprep.subr.mxu0 0.0
    %747 = vmatpush2.msra.mxu0 0.0
    %748 = vmatprep.subr.mxu0 0.0
    %749 = vmatpush2.msra.mxu0 0.0
    %750 = vmatprep.subr.mxu0 0.0
    %751 = vmatpush2.msra.mxu0 0.0
    %752 = vmatprep.subr.mxu0 0.0
    %753 = vmatpush2.msra.mxu0 0.0
    %754 = vmatprep.subr.mxu0 0.0
    %755 = vmatpush2.msra.mxu0 0.0
    %756 = vmatprep.subr.mxu0 0.0
    %757 = vmatpush2.msra.mxu0 0.0
    %758 = vmatprep.subr.mxu0 0.0
    %759 = vmatpush2.msra.mxu0 0.0
    %760 = vmatprep.subr.mxu0 0.0
    %761 = vmatpush2.msra.mxu0 0.0
    %762 = vmatprep.subr.mxu0 0.0
    %763 = vmatpush2.msra.mxu0 0.0
    %764 = vmatprep.subr.mxu0 0.0
    %765 = vmatpush2.msra.mxu0 0.0
    %766 = vmatprep.mubr.f32.mxu0 0.0
    %767 = vmatmul.mubr.f32.gmra.mxu0 %v700
    %v768 = vpop.f32.mrf.mxu0
    %v769 = vadd.f32 %v691, %v768
    %v770 = vpop.f32.mrf.mxu0
    %v771 = vadd.f32 %v695, %v770
    %772 = vdwg.mxu0
    %vm773 = vcmp.gt.f32.partialorder %v769, 0.0
    %vm774 = vcmp.gt.f32.partialorder %v771, 0.0
    %v775 = vmul.f32 %v769, 0.01
    %v776 = vmul.f32 %v771, 0.01
    %v777 = vsel %vm773, %v769, %v775
    %v778 = vsel %vm774, %v771, %v776
    %v779 = vld [vmem:[%s14] sm:$0xff]
    %v780 = vld [vmem:[%s14 + $0x8] sm:$0xff]
    %v781 = vld [vmem:[%s14 + $0x10] sm:$0xff]
    %v782 = vld [vmem:[%s14 + $0x18] sm:$0xff]
    %v783 = vld [vmem:[%s14 + $0x20] sm:$0xff]
    %v784 = vld [vmem:[%s14 + $0x28] sm:$0xff]
    %v785 = vld [vmem:[%s14 + $0x30] sm:$0xff]
    %v786 = vld [vmem:[%s14 + $0x38] sm:$0xff]
    %v787 = vld [vmem:[%s14 + $0x40] sm:$0xff]
    %v788 = vld [vmem:[%s14 + $0x48] sm:$0xff]
    %v789 = vld [vmem:[%s14 + $0x50] sm:$0xff]
    %v790 = vld [vmem:[%s14 + $0x58] sm:$0xff]
    %v791 = vld [vmem:[%s14 + $0x60] sm:$0xff]
    %v792 = vld [vmem:[%s14 + $0x68] sm:$0xff]
    %v793 = vld [vmem:[%s14 + $0x70] sm:$0xff]
    %v794 = vld [vmem:[%s14 + $0x78] sm:$0xff]
    %v795 = vld [vmem:[%s14 + $0x80] sm:$0xff]
    %v796 = vld [vmem:[%s14 + $0x88] sm:$0xff]
    %v797 = vld [vmem:[%s14 + $0x90] sm:$0xff]
    %v798 = vld [vmem:[%s14 + $0x98] sm:$0xff]
    %v799 = vld [vmem:[%s14 + $0xa0] sm:$0xff]
    %v800 = vld [vmem:[%s14 + $0xa8] sm:$0xff]
    %v801 = vld [vmem:[%s14 + $0xb0] sm:$0xff]
    %v802 = vld [vmem:[%s14 + $0xb8] sm:$0xff]
    %v803 = vld [vmem:[%s14 + $0xc0] sm:$0xff]
    %v804 = vld [vmem:[%s14 + $0xc8] sm:$0xff]
    %v805 = vld [vmem:[%s14 + $0xd0] sm:$0xff]
    %v806 = vld [vmem:[%s14 + $0xd8] sm:$0xff]
    %v807 = vld [vmem:[%s14 + $0xe0] sm:$0xff]
    %v808 = vld [vmem:[%s14 + $0xe8] sm:$0xff]
    %v809 = vld [vmem:[%s14 + $0xf0] sm:$0xff]
    %v810 = vld [vmem:[%s14 + $0xf8] sm:$0xff]
    %v811 = vld [vmem:[%s15] sm:$0x1]
    %v813 = vlaneseq
    %v814 = vshrl.u32 %v813, 7
    %v815 = vsub.s32 0, %v814
    %v816 = vrot.slane %v811, %v815
    %818 = vmatprep.subr.mxu0 0.0
    %819 = vmatpush1.msra.mxu0 %v794
    %820 = vmatprep.subr.mxu0 0.0
    %821 = vmatpush1.msra.mxu0 %v793
    %822 = vmatprep.subr.mxu0 0.0
    %823 = vmatpush1.msra.mxu0 %v792
    %824 = vmatprep.subr.mxu0 0.0
    %825 = vmatpush1.msra.mxu0 %v791
    %826 = vmatprep.subr.mxu0 0.0
    %827 = vmatpush1.msra.mxu0 %v790
    %828 = vmatprep.subr.mxu0 0.0
    %829 = vmatpush1.msra.mxu0 %v789
    %830 = vmatprep.subr.mxu0 0.0
    %831 = vmatpush1.msra.mxu0 %v788
    %832 = vmatprep.subr.mxu0 0.0
    %833 = vmatpush1.msra.mxu0 %v787
    %834 = vmatprep.subr.mxu0 0.0
    %835 = vmatpush1.msra.mxu0 %v786
    %836 = vmatprep.subr.mxu0 0.0
    %837 = vmatpush1.msra.mxu0 %v785
    %838 = vmatprep.subr.mxu0 0.0
    %839 = vmatpush1.msra.mxu0 %v784
    %840 = vmatprep.subr.mxu0 0.0
    %841 = vmatpush1.msra.mxu0 %v783
    %842 = vmatprep.subr.mxu0 0.0
    %843 = vmatpush1.msra.mxu0 %v782
    %844 = vmatprep.subr.mxu0 0.0
    %845 = vmatpush1.msra.mxu0 %v781
    %846 = vmatprep.subr.mxu0 0.0
    %847 = vmatpush1.msra.mxu0 %v780
    %848 = vmatprep.subr.mxu0 0.0
    %849 = vmatpush1.msra.mxu0 %v779
    %850 = vmatprep.subr.mxu0 0.0
    %851 = vmatpush2.msra.mxu0 %v810
    %852 = vmatprep.subr.mxu0 0.0
    %853 = vmatpush2.msra.mxu0 %v809
    %854 = vmatprep.subr.mxu0 0.0
    %855 = vmatpush2.msra.mxu0 %v808
    %856 = vmatprep.subr.mxu0 0.0
    %857 = vmatpush2.msra.mxu0 %v807
    %858 = vmatprep.subr.mxu0 0.0
    %859 = vmatpush2.msra.mxu0 %v806
    %860 = vmatprep.subr.mxu0 0.0
    %861 = vmatpush2.msra.mxu0 %v805
    %862 = vmatprep.subr.mxu0 0.0
    %863 = vmatpush2.msra.mxu0 %v804
    %864 = vmatprep.subr.mxu0 0.0
    %865 = vmatpush2.msra.mxu0 %v803
    %866 = vmatprep.subr.mxu0 0.0
    %867 = vmatpush2.msra.mxu0 %v802
    %868 = vmatprep.subr.mxu0 0.0
    %869 = vmatpush2.msra.mxu0 %v801
    %870 = vmatprep.subr.mxu0 0.0
    %871 = vmatpush2.msra.mxu0 %v800
    %872 = vmatprep.subr.mxu0 0.0
    %873 = vmatpush2.msra.mxu0 %v799
    %874 = vmatprep.subr.mxu0 0.0
    %875 = vmatpush2.msra.mxu0 %v798
    %876 = vmatprep.subr.mxu0 0.0
    %877 = vmatpush2.msra.mxu0 %v797
    %878 = vmatprep.subr.mxu0 0.0
    %879 = vmatpush2.msra.mxu0 %v796
    %880 = vmatprep.subr.mxu0 0.0
    %881 = vmatpush2.msra.mxu0 %v795
    %882 = vmatprep.mubr.f32.mxu0 %v778
    %883 = vmatmul.mubr.f32.gmra.mxu0 %v777
    %v884 = vpop.f32.mrf.mxu0
    %v885 = vadd.f32 %v816, %v884
    %v886 = vpop.f32.mrf.mxu0
    %887 = vdwg.mxu0
    %vm888 = vcmask 146432
    %889 = vst.msk [vmem:[#allocation10] sm:$0xff] %vm888, %v885
    // Predicated region
    $region82: #{tpu_custom_call.1} parent=1 // pred_check
      _
    $region83: #{tpu_custom_call.1} parent=1 // pred_check_branch
      %891 = sbr.rel (0) target = $region85
    $region84: #{tpu_custom_call.1} parent=1 // pred_region
      %s893 = ssub.s32 128, 128
      %894 = vsyncadd [#allocation4], %s893
      %s896 = sshll.u32 [#allocation10], 4
      %s897 = int_to_ptr.vmem [resolvable:$true] %s896
      %899 = dma.vmem_to_hbm [thread:$0]  %s897, 128, %s16, [#allocation4]
    $region85: #{tpu_custom_call.1} parent=1 // pred_fallthru
      _
    // Predicated region
    $region86: #{tpu_custom_call.1} parent=1 // pred_check
      _
    $region87: #{tpu_custom_call.1} parent=1 // pred_check_branch
      %901 = sbr.rel (0) target = $region89
    $region88: #{tpu_custom_call.1} parent=1 // pred_region
      %902 = dma.done [#allocation4], 128
    $region89: #{tpu_custom_call.1} parent=1 // pred_fallthru
      _
    %903 = vsyncpa [#allocation3], 1
    %904 = vsyncpa [#allocation6], 1
    %905 = vsyncpa [#allocation9], 1
    %906 = vsyncpa [#allocation4], 1

</llo_original>
